<compile_context>
chip_gen: v6e
topology: v6e:2x2x1
jax: 0.10.0
libtpu: 0.0.40
codegen_flags: <defaults>
</compile_context>

<pallas_src>
import jax
import jax.numpy as jnp
from jax.experimental import pallas as pl
from jax.experimental.pallas import tpu as pltpu


def _sse_kernel(x_ref, w_ref, b_ref, o_ref):
    # x_ref: (nb, C, T) current block, native dtype
    # w_ref: (C, 1)     1x1 conv weights (f32, VMEM, constant across steps)
    # b_ref: (1,)       conv bias (f32, SMEM scalar)
    # o_ref: (nb, C, T) output block, same dtype as input
    x = x_ref[...]                                     # native dtype
    w = w_ref[...]                                     # (C, 1) f32
    b = b_ref[0]                                       # scalar f32
    # Pointwise conv C -> 1: per-lane weighted sum over channels (sublanes),
    # accumulated in f32, sigmoid on the EUP.  Kernel is HBM-bound; VPU/XLU
    # have plenty of slack, so no need to route this through the MXU.
    s = jnp.sum(x.astype(jnp.float32) * w, axis=1, keepdims=True) + b  # (nb, 1, T)
    s = jax.nn.sigmoid(s)
    # Multiply in the native dtype (no full-block f32 copy held live).
    o_ref[...] = x * s.astype(o_ref.dtype)


def sse_forward(x_nchw, weight, bias, *, block_budget_bytes=2 * 1024 * 1024):
    """x_nchw: (N, C, H, W); weight: (1, C, 1, 1); bias: (1,) — like nn.Conv2d(C, 1, 1)."""
    N, C, H, W = x_nchw.shape
    HW = H * W
    itemsize = jnp.dtype(x_nchw.dtype).itemsize

    x = x_nchw.reshape(N, C, HW)          # contiguous merge -> free reshape
    w = weight.reshape(C, 1).astype(jnp.float32)
    b = bias.reshape(1).astype(jnp.float32)

    per_batch_bytes = C * HW * itemsize

    if per_batch_bytes <= block_budget_bytes:
        # Whole (C, HW) plane per batch fits the per-step budget: fold batches
        # into one block so each grid step moves enough bytes to amortize the
        # per-step overhead.  Keep at least 2 grid steps when N >= 2 so both
        # TensorCores (v7x megacore) get work.
        nb_max = max(1, block_budget_bytes // per_batch_bytes)
        if N >= 2:
            nb_max = max(1, min(nb_max, N // 2))
        nb = 1
        for d in range(min(N, nb_max), 0, -1):
            if N % d == 0:
                nb = d
                break
        grid = (N // nb,)
        block = (nb, C, HW)               # last two dims equal full array dims
        x_map = lambda i: (i, 0, 0)
    else:
        # Tile the flattened spatial axis (T a multiple of 128) and flatten
        # (batch, tile) into ONE parallel grid axis.  The ragged last tile per
        # batch is handled by Pallas (no pad / no output slice).
        lane_bytes = C * itemsize
        T = max(128, (block_budget_bytes // lane_bytes) // 128 * 128)
        T = min(T, ((HW + 127) // 128) * 128)
        num_tiles = -(-HW // T)
        grid = (N * num_tiles,)
        block = (1, C, T)
        x_map = lambda i: (i // num_tiles, 0, i % num_tiles)

    out = pl.pallas_call(
        _sse_kernel,
        out_shape=jax.ShapeDtypeStruct((N, C, HW), x.dtype),
        grid_spec=pltpu.PrefetchScalarGridSpec(
            num_scalar_prefetch=0,
            grid=grid,
            in_specs=[
                pl.BlockSpec(block, x_map),                           # x block
                pl.BlockSpec((C, 1), lambda i: (0, 0)),               # weights (resident)
                pl.BlockSpec(memory_space=pltpu.MemorySpace.SMEM),    # bias scalar
            ],
            out_specs=pl.BlockSpec(block, x_map),
        ),
        compiler_params=pltpu.CompilerParams(
            dimension_semantics=("parallel",),
            # Footprint: ~4 double-buffered blocks (~8-10 MiB at the 2 MiB
            # budget) + tiny weight tile; 48 MiB is safe on v5e/v6e (128 MiB
            # physical) and leaves headroom on v7x (64 MiB physical).
            vmem_limit_bytes=48 * 1024 * 1024,
        ),
    )(x, w, b)

    return out.reshape(N, C, H, W)


def _reference(x, weight, bias):
    C = x.shape[1]
    s = jax.nn.sigmoid(jnp.einsum("nchw,c->nhw", x, weight.reshape(C)) + bias[0])
    return x * s[:, None, :, :]


if __name__ == "__main__":
    key = jax.random.PRNGKey(0)
    kx, kw, kb, kx2 = jax.random.split(key, 4)

    # Case 1: small module-sized input -> batch-folded single-block path.
    N, C, H, W = 2, 4, 16, 16
    x = jax.random.normal(kx, (N, C, H, W), dtype=jnp.float32)
    weight = jax.random.normal(kw, (1, C, 1, 1), dtype=jnp.float32) * 0.1
    bias = jax.random.normal(kb, (1,), dtype=jnp.float32) * 0.1

    y = jax.block_until_ready(sse_forward(x, weight, bias))
    y_ref = _reference(x, weight, bias)
    assert y.dtype == x.dtype, "dtype mismatch"
    assert jnp.allclose(y, y_ref, atol=1e-5, rtol=1e-5), "mismatch vs reference (case 1)"

    # Case 2: force the tiled / ragged-last-block path (HW = 225 not a
    # multiple of 128) by using a tiny per-step budget.
    x2 = jax.random.normal(kx2, (1, C, 15, 15), dtype=jnp.float32)
    y2 = jax.block_until_ready(sse_forward(x2, weight, bias, block_budget_bytes=1024))
    y2_ref = _reference(x2, weight, bias)
    assert jnp.allclose(y2, y2_ref, atol=1e-5, rtol=1e-5), "mismatch vs reference (case 2)"

    print("KERNEL_OK")
</pallas_src>

<mosaic_0001>
module attributes {stable_mosaic.version = 11 : i64} {
  func.func @_sse_kernel(%arg0: i32, %arg1: memref<1x4x256xf32, #tpu.memory_space<vmem>>, %arg2: memref<4x1xf32, #tpu.memory_space<vmem>>, %arg3: memref<1xf32, #tpu.memory_space<smem>>, %arg4: memref<1x4x256xf32, #tpu.memory_space<vmem>>) attributes {dimension_semantics = [#tpu.dimension_semantics<parallel>], iteration_bounds = array<i64: 2>, scalar_prefetch = 0 : i64, scratch_operands = 0 : i64, tpu.core_type = #tpu.core_type<tc>, window_params = [{transform_indices = @transform_0, window_bounds = array<i64: 1, 4, 256>}, {pipeline_mode = #tpu.pipeline_mode<synchronous>, transform_indices = @transform_1, window_bounds = array<i64: 4, 1>}, {transform_indices = @transform_2, window_bounds = array<i64: 1>}, {transform_indices = @transform_3, window_bounds = array<i64: 1, 4, 256>}]} {
    %c0 = arith.constant 0 : index
    %c0_0 = arith.constant 0 : index
    %c0_1 = arith.constant 0 : index
    %0 = vector.load %arg1[%c0, %c0_0, %c0_1] : memref<1x4x256xf32, #tpu.memory_space<vmem>>, vector<1x4x256xf32>
    %c0_2 = arith.constant 0 : index
    %c0_3 = arith.constant 0 : index
    %1 = vector.load %arg2[%c0_2, %c0_3] : memref<4x1xf32, #tpu.memory_space<vmem>>, vector<4x1xf32>
    %c0_4 = arith.constant 0 : index
    %2 = memref.load %arg3[%c0_4] : memref<1xf32, #tpu.memory_space<smem>>
    %3 = vector.shape_cast %1 : vector<4x1xf32> to vector<1x4x1xf32>
    %4 = vector.broadcast %3 : vector<1x4x1xf32> to vector<1x4x256xf32>
    %5 = arith.mulf %0, %4 : vector<1x4x256xf32>
    %cst = arith.constant dense<0.000000e+00> : vector<1x256xf32>
    %6 = vector.multi_reduction <add>, %5, %cst [1] : vector<1x4x256xf32> to vector<1x256xf32>
    %7 = vector.shape_cast %6 : vector<1x256xf32> to vector<1x1x256xf32>
    %8 = vector.broadcast %2 : f32 to vector<1x1x256xf32>
    %9 = arith.addf %7, %8 : vector<1x1x256xf32>
    %10 = arith.negf %9 : vector<1x1x256xf32>
    %11 = math.exp %10 : vector<1x1x256xf32>
    %cst_5 = arith.constant 1.000000e+00 : f32
    %12 = vector.broadcast %cst_5 : f32 to vector<1x1x256xf32>
    %13 = arith.addf %12, %11 : vector<1x1x256xf32>
    %14 = arith.divf %12, %13 : vector<1x1x256xf32>
    %15 = vector.broadcast %14 : vector<1x1x256xf32> to vector<1x4x256xf32>
    %16 = arith.mulf %0, %15 : vector<1x4x256xf32>
    %c0_6 = arith.constant 0 : index
    %c0_7 = arith.constant 0 : index
    %c0_8 = arith.constant 0 : index
    %17 = vector.load %arg4[%c0_6, %c0_7, %c0_8] : memref<1x4x256xf32, #tpu.memory_space<vmem>>, vector<1x4x256xf32>
    tpu.vector_store %arg4[%c0_6, %c0_7, %c0_8], %16 {strides = array<i32>} : memref<1x4x256xf32, #tpu.memory_space<vmem>>, vector<1x4x256xf32>,
    return
  }
  func.func @transform_0(%arg0: i32) -> (i32, i32, i32) {
    %c0_i32 = arith.constant 0 : i32
    %c0_i32_0 = arith.constant 0 : i32
    %c0_i32_1 = arith.constant 0 : i32
    return %arg0, %c0_i32, %c0_i32_0 : i32, i32, i32
  }
  func.func @transform_1(%arg0: i32) -> (i32, i32) {
    %c0_i32 = arith.constant 0 : i32
    %c0_i32_0 = arith.constant 0 : i32
    %c0_i32_1 = arith.constant 0 : i32
    return %c0_i32, %c0_i32_0 : i32, i32
  }
  func.func @transform_2(%arg0: i32) -> i32 {
    %c0_i32 = arith.constant 0 : i32
    %c0_i32_0 = arith.constant 0 : i32
    return %c0_i32 : i32
  }
  func.func @transform_3(%arg0: i32) -> (i32, i32, i32) {
    %c0_i32 = arith.constant 0 : i32
    %c0_i32_0 = arith.constant 0 : i32
    %c0_i32_1 = arith.constant 0 : i32
    return %arg0, %c0_i32, %c0_i32_0 : i32, i32, i32
  }
}

</mosaic_0001>

<llo_original>
// kernel: tpu_custom_call.1
$region0: #{tpu_custom_call.1}
  #allocation0 [shape = 'u32[]', space=smem, size = 0x4, offset = 0x4, fixed_abs, tag = 'smem constant byte address 0x4 - core index']
  #allocation1 [shape = 'u32[144,128]{1,0:T(1,128)}', space=vmem, size = 0x12000, scoped, tag = 'internal scratch']
  #allocation2 [shape = 'f32[1]{0:T(128)S(6)}', space=smem, size = 0x200, scoped, tag = 'scoped memory for tpu_custom_call.1']
  %s0 = inlined_call_operand.hbm [shape: f32[2,4,256], index: 0, kind: input, shape index: {}]
  %s1 = inlined_call_operand.vmem [shape: f32[4,1], index: 1, kind: input, shape index: {}]
  %s2 = inlined_call_operand.<no memory space> [shape: f32[1], index: 2, kind: input, shape index: {}]
  %s3 = inlined_call_operand.hbm [shape: f32[2,4,256], index: 3, kind: output, shape index: {}]
  %s4 = sld [smem:[#allocation0]]
  $region49: #{tpu_custom_call.1} parent=0
    _
  %s6 = ssub.s32 1, %s4
  %s7 = scalar_select 0, %s6, %s4
  %8 = sst [smem:[#allocation2]] %s2
  $region1: #{tpu_custom_call.1} parent=0
    #allocation3 [shape = 'u8[8192]{0}', space=vmem, size = 0x2000, scoped, tag = 'input window, operand 0']
    #allocation4 [shape = 's32[2]{0}', space=sflag, size = 0x8, scoped, tag = 'scoped memory for tpu_custom_call.1']
    #allocation5 [shape = 's32[2]{0}', space=sflag, size = 0x8, scoped, tag = 'scoped memory for tpu_custom_call.1']
    #allocation6 [shape = 'u8[8192]{0}', space=vmem, size = 0x2000, scoped, tag = 'output window, operand 0']
    %9 = vsyncpa [#allocation4], 0
    %s10 = scalar_lea.sflag [#allocation4], 1
    %11 = vsyncpa %s10, 0
    %12 = vsyncpa [#allocation5], 0
    %s13 = scalar_lea.sflag [#allocation5], 1
    %14 = vsyncpa %s13, 0
    loop: start=0, step=1, limit=4
    $region2: #{tpu_custom_call.1} parent=1 // loop_pre_header
      _
    $region3: #{tpu_custom_call.1} parent=1 // loop_header
      %s16 = sphi 0, %s20
      %p17 = scmp.ge.s32.totalorder %s16, 4
      %s26 = sphi 0, %s28
      %s29 = sphi 0, %s26
      %s30 = sphi 0, %s29
      %s46 = sphi 0, %s30
      %s50 = sphi 0, %s50
      %s52 = sphi 0, %s50
      %s53 = sphi 0, %s52
      %s67 = sphi 0, %s53
      %s71 = sphi 0, %s71
      %s73 = sphi 0, %s71
      %s74 = sphi 0, %s73
      %s88 = sphi 0, %s74
      %s94 = sphi 0, %s96
      %s97 = sphi 0, %s94
      %s98 = sphi 0, %s97
      %s114 = sphi 0, %s98
    $region4: #{tpu_custom_call.1} parent=1 // loop_header_branch
      %19 = sbr.rel (%p17) target = $region8
    $region5: #{tpu_custom_call.1} parent=1 // loop_body
      %s21 = ssub.s32 %s16, 1
      %s22 = ssub.s32 %s16, 2
      %s23 = sadd.s32 %s16, 1
      %s24 = ssub.s32 %s16, %s23
      %p25 = scmp.eq.s32.totalorder %s24, 0
      %s27 = sadd.s32 %s26, 1
      %s28 = scalar_select %p25, %s26, %s27
      %p31 = pneg %p25
      %p32 = scmp.eq.s32.totalorder %s16, 1
      %p33 = por %p31, %p32
      %p34 = scmp.ne.s32.totalorder %s26, %s29
      %p35 = scmp.eq.s32.totalorder %s16, 0
      %p36 = por %p34, %p35
      %p37 = scmp.ne.s32.totalorder %s26, %s29
      %p38 = scmp.eq.s32.totalorder %s21, 1
      %p39 = por %p37, %p38
      %p40 = scmp.ne.s32.totalorder %s29, %s30
      %p41 = scmp.eq.s32.totalorder %s21, 0
      %p42 = por %p40, %p41
      %p43 = scmp.ne.s32.totalorder %s29, %s30
      %p44 = scmp.eq.s32.totalorder %s22, 1
      %p45 = por %p43, %p44
      %p47 = scmp.ne.s32.totalorder %s30, %s46
      %p48 = scmp.eq.s32.totalorder %s22, 0
      %p49 = por %p47, %p48
      %s51 = sadd.s32 %s50, 1
      %p54 = scmp.eq.s32.totalorder %s16, 1
      %p55 = scmp.ne.s32.totalorder %s50, %s52
      %p56 = scmp.eq.s32.totalorder %s16, 0
      %p57 = por %p55, %p56
      %p58 = scmp.ne.s32.totalorder %s50, %s52
      %p59 = scmp.eq.s32.totalorder %s21, 1
      %p60 = por %p58, %p59
      %p61 = scmp.ne.s32.totalorder %s52, %s53
      %p62 = scmp.eq.s32.totalorder %s21, 0
      %p63 = por %p61, %p62
      %p64 = scmp.ne.s32.totalorder %s52, %s53
      %p65 = scmp.eq.s32.totalorder %s22, 1
      %p66 = por %p64, %p65
      %p68 = scmp.ne.s32.totalorder %s53, %s67
      %p69 = scmp.eq.s32.totalorder %s22, 0
      %p70 = por %p68, %p69
      %s72 = sadd.s32 %s71, 1
      %p75 = scmp.eq.s32.totalorder %s16, 1
      %p76 = scmp.ne.s32.totalorder %s71, %s73
      %p77 = scmp.eq.s32.totalorder %s16, 0
      %p78 = por %p76, %p77
      %p79 = scmp.ne.s32.totalorder %s71, %s73
      %p80 = scmp.eq.s32.totalorder %s21, 1
      %p81 = por %p79, %p80
      %p82 = scmp.ne.s32.totalorder %s73, %s74
      %p83 = scmp.eq.s32.totalorder %s21, 0
      %p84 = por %p82, %p83
      %p85 = scmp.ne.s32.totalorder %s73, %s74
      %p86 = scmp.eq.s32.totalorder %s22, 1
      %p87 = por %p85, %p86
      %p89 = scmp.ne.s32.totalorder %s74, %s88
      %p90 = scmp.eq.s32.totalorder %s22, 0
      %p91 = por %p89, %p90
      %s92 = ssub.s32 %s16, %s23
      %p93 = scmp.eq.s32.totalorder %s92, 0
      %s95 = sadd.s32 %s94, 1
      %s96 = scalar_select %p93, %s94, %s95
      %p99 = pneg %p93
      %p100 = scmp.eq.s32.totalorder %s16, 1
      %p101 = por %p99, %p100
      %p102 = scmp.ne.s32.totalorder %s94, %s97
      %p103 = scmp.eq.s32.totalorder %s16, 0
      %p104 = por %p102, %p103
      %p105 = scmp.ne.s32.totalorder %s94, %s97
      %p106 = scmp.eq.s32.totalorder %s21, 1
      %p107 = por %p105, %p106
      %p108 = scmp.ne.s32.totalorder %s97, %s98
      %p109 = scmp.eq.s32.totalorder %s21, 0
      %p110 = por %p108, %p109
      %p111 = scmp.ne.s32.totalorder %s97, %s98
      %p112 = scmp.eq.s32.totalorder %s22, 1
      %p113 = por %p111, %p112
      %p115 = scmp.ne.s32.totalorder %s98, %s114
      %p116 = scmp.eq.s32.totalorder %s22, 0
      %p117 = por %p115, %p116
      %p118 = scmp.le.s32.totalorder 1, %s16
      %p119 = scmp.lt.s32.totalorder %s16, 3
      %p120 = pnand %p118, %p119
      %p121 = pneg %p120
      // Predicated region
      $region9: #{tpu_custom_call.1} parent=5 // pred_check
        _
      $region10: #{tpu_custom_call.1} parent=5 // pred_check_branch
        %123 = sbr.rel (%p120) target = $region12
      $region11: #{tpu_custom_call.1} parent=5 // pred_region
        %s124 = ssub.s32 %s16, 1
        // Predicated region
        $region13: #{tpu_custom_call.1} parent=11 // pred_check
          %p125 = pneg %p63
        $region14: #{tpu_custom_call.1} parent=11 // pred_check_branch
          %127 = sbr.rel (%p125) target = $region16
        $region15: #{tpu_custom_call.1} parent=11 // pred_region
          _
        $region16: #{tpu_custom_call.1} parent=11 // pred_fallthru
          _
        // Predicated region
        $region17: #{tpu_custom_call.1} parent=11 // pred_check
          %p128 = pneg %p84
        $region18: #{tpu_custom_call.1} parent=11 // pred_check_branch
          %130 = sbr.rel (%p128) target = $region20
        $region19: #{tpu_custom_call.1} parent=11 // pred_region
          _
        $region20: #{tpu_custom_call.1} parent=11 // pred_fallthru
          _
      $region12: #{tpu_custom_call.1} parent=5 // pred_fallthru
        _
      %p131 = scmp.lt.s32.totalorder %s16, 2
      // Predicated region
      $region21: #{tpu_custom_call.1} parent=5 // pred_check
        %p132 = pneg %p131
      $region22: #{tpu_custom_call.1} parent=5 // pred_check_branch
        %134 = sbr.rel (%p132) target = $region24
      $region23: #{tpu_custom_call.1} parent=5 // pred_region
        // Predicated region
        $region25: #{tpu_custom_call.1} parent=23 // pred_check
          %p135 = pneg %p36
        $region26: #{tpu_custom_call.1} parent=23 // pred_check_branch
          %137 = sbr.rel (%p135) target = $region28
        $region27: #{tpu_custom_call.1} parent=23 // pred_region
          %s138 = sand.u32 %s26, 1
          %s139 = scalar_lea.sflag [#allocation4], %s138
          %s140 = sand.u32 %s26, 1
          %s141 = smul.addr %s140, 8
          %s142 = scalar_lea.vmem [#allocation3], %s141
          %s144 = ssub.s32 128, 128
          %145 = vsyncadd %s139, %s144
          %s146 = smul.addr %s16, 2
          %s147 = smul.addr %s146, 64
          %s148 = scalar_lea.hbm %s0, %s147
          %s150 = sshll.u32 %s142, 4
          %s151 = int_to_ptr.vmem [resolvable:$true] %s150
          %153 = dma.hbm_to_vmem [thread:$0]  %s148, 128, %s151, %s139
        $region28: #{tpu_custom_call.1} parent=23 // pred_fallthru
          _
      $region24: #{tpu_custom_call.1} parent=5 // pred_fallthru
        _
      %p154 = scmp.le.s32.totalorder 1, %s16
      %p155 = scmp.lt.s32.totalorder %s16, 3
      %p156 = pnand %p154, %p155
      %p157 = pneg %p156
      // Predicated region
      $region29: #{tpu_custom_call.1} parent=5 // pred_check
        _
      $region30: #{tpu_custom_call.1} parent=5 // pred_check_branch
        %159 = sbr.rel (%p156) target = $region32
      $region31: #{tpu_custom_call.1} parent=5 // pred_region
        %s160 = ssub.s32 %s16, 1
        %s161 = sand.u32 %s29, 1
        %s162 = scalar_lea.sflag [#allocation4], %s161
        %s163 = sand.u32 %s29, 1
        %s164 = smul.addr %s163, 8
        %s165 = scalar_lea.vmem [#allocation3], %s164
        // Predicated region
        $region33: #{tpu_custom_call.1} parent=31 // pred_check
          %p166 = pneg %p42
        $region34: #{tpu_custom_call.1} parent=31 // pred_check_branch
          %168 = sbr.rel (%p166) target = $region36
        $region35: #{tpu_custom_call.1} parent=31 // pred_region
          %169 = dma.done %s162, 128
        $region36: #{tpu_custom_call.1} parent=31 // pred_fallthru
          _
        %s170 = sand.u32 %s29, 1
        %s171 = scalar_lea.sflag [#allocation4], %s170
        %s172 = sand.u32 %s29, 1
        %s173 = smul.addr %s172, 8
        %s174 = scalar_lea.vmem [#allocation3], %s173
        %p175 = pneg %p42
        %p176 = pneg %p39
        %p177 = pneg %p63
        %p178 = pneg %p60
        %p179 = pneg %p84
        %p180 = pneg %p81
        %p181 = pneg %p110
        %p182 = pneg %p107
        %s183 = sand.u32 %s97, 1
        %s184 = scalar_lea.sflag [#allocation5], %s183
        %s185 = sand.u32 %s97, 1
        %s186 = smul.addr %s185, 8
        %s187 = scalar_lea.vmem [#allocation6], %s186
        %v188 = vld [vmem:[%s165] sm:$0xff]
        %v189 = vld [vmem:[%s1] sm:$0xf]
        %s190 = sld [smem:[#allocation2]]
        %192 = vset.pattern.permute.xlu0 0
        %193 = vperm.xlu0 %192, %v189
        %v194 = vpop.permute.xlu0 %193
        %v196 = vunpack.c.l.s4 839922192
        %v197 = vunpack.c.0.s8 %v196
        %v198 = vlaneseq
        %v199 = vshrl.u32 %v198, 7
        %v200 = vsub.s32 %v197, %v199
        %v201 = vrot.slane %v194, %v200
        %v203 = vmul.f32 %v188, %v201
        %v205 = vcombine.high %v203, %v203
        %vm207 = vcmask 1043456
        %v208 = vsel %vm207, %v203, 0.0
        %v209 = vrot.slane %v208, 4
        %v210 = vadd.f32 %v208, %v209
        %v211 = vrot.slane %v210, 2
        %v212 = vadd.f32 %v210, %v211
        %v213 = vrot.slane %v212, 1
        %v214 = vadd.f32 %v212, %v213
        %v215 = vsel %vm207, %v205, 0.0
        %v216 = vrot.slane %v215, 4
        %v217 = vadd.f32 %v215, %v216
        %v218 = vrot.slane %v217, 2
        %v219 = vadd.f32 %v217, %v218
        %v220 = vrot.slane %v219, 1
        %v221 = vadd.f32 %v219, %v220
        %v222 = vstv %s190
        %v223 = vadd.f32 %v214, %v222
        %v224 = vadd.f32 %v221, %v222
        %v225 = vxor.u32 %v223, 2147483648
        %v226 = vxor.u32 %v224, 2147483648
        %v227 = vmul.f32 %v225, 1.442695
        %v228 = vpow.pop %v227
        %v229 = vmul.f32 %v226, 1.442695
        %v230 = vpow.pop %v229
        %v231 = vadd.f32 %v228, 1.0
        %v232 = vadd.f32 %v230, 1.0
        %v233 = vrcp.pop %v231
        %v234 = vmul.f32 1.0, %v233
        %v235 = vrcp.pop %v232
        %v236 = vmul.f32 1.0, %v235
        %v239 = vcombine.low %v234, %v236
        %v241 = vmul.f32 %v188, %v239
        %242 = vst [vmem:[%s187] sm:$0xff] %v241
        %s243 = sand.u32 %s97, 1
        %s244 = scalar_lea.sflag [#allocation5], %s243
        %s245 = sand.u32 %s97, 1
        %s246 = smul.addr %s245, 8
        %s247 = scalar_lea.vmem [#allocation6], %s246
        // Predicated region
        $region37: #{tpu_custom_call.1} parent=31 // pred_check
          %p248 = pneg %p107
        $region38: #{tpu_custom_call.1} parent=31 // pred_check_branch
          %250 = sbr.rel (%p248) target = $region40
        $region39: #{tpu_custom_call.1} parent=31 // pred_region
          %s252 = ssub.s32 128, 128
          %253 = vsyncadd %s244, %s252
          %s254 = smul.addr %s21, 2
          %s255 = smul.addr %s254, 64
          %s256 = scalar_lea.hbm %s3, %s255
          %s258 = sshll.u32 %s247, 4
          %s259 = int_to_ptr.vmem [resolvable:$true] %s258
          %261 = dma.vmem_to_hbm [thread:$0]  %s259, 128, %s256, %s244
        $region40: #{tpu_custom_call.1} parent=31 // pred_fallthru
          _
      $region32: #{tpu_custom_call.1} parent=5 // pred_fallthru
        _
      %p262 = scmp.le.s32.totalorder 2, %s16
      // Predicated region
      $region41: #{tpu_custom_call.1} parent=5 // pred_check
        %p263 = pneg %p262
      $region42: #{tpu_custom_call.1} parent=5 // pred_check_branch
        %265 = sbr.rel (%p263) target = $region44
      $region43: #{tpu_custom_call.1} parent=5 // pred_region
        %s266 = ssub.s32 %s16, 2
        // Predicated region
        $region45: #{tpu_custom_call.1} parent=43 // pred_check
          %p267 = pneg %p113
        $region46: #{tpu_custom_call.1} parent=43 // pred_check_branch
          %269 = sbr.rel (%p267) target = $region48
        $region47: #{tpu_custom_call.1} parent=43 // pred_region
          %s270 = sand.u32 %s98, 1
          %s271 = scalar_lea.sflag [#allocation5], %s270
          %s272 = sand.u32 %s98, 1
          %s273 = smul.addr %s272, 8
          %s274 = scalar_lea.vmem [#allocation6], %s273
          %275 = dma.done %s271, 128
        $region48: #{tpu_custom_call.1} parent=43 // pred_fallthru
          _
      $region44: #{tpu_custom_call.1} parent=5 // pred_fallthru
        _
    $region6: #{tpu_custom_call.1} parent=1 // loop_footer
      %s20 = sadd.s32 1, %s16
    $region7: #{tpu_custom_call.1} parent=1 // loop_footer_branch
      %15 = sbr.rel target = $region3
    $region8: #{tpu_custom_call.1} parent=1 // loop_exit
      _
    %276 = vsyncpa [#allocation4], 1
    %s277 = scalar_lea.sflag [#allocation4], 1
    %278 = vsyncpa %s277, 1
    %279 = vsyncpa [#allocation5], 1
    %s280 = scalar_lea.sflag [#allocation5], 1
    %281 = vsyncpa %s280, 1

</llo_original>
